<compile_context>
chip_gen: v7x
topology: tpu7x:2x2x1
jax: 0.10.0
libtpu: 0.0.40
codegen_flags: <defaults>
</compile_context>

<pallas_src>
import functools

import jax
import jax.numpy as jnp
from jax import lax
from jax.experimental import pallas as pl
from jax.experimental.pallas import tpu as pltpu

ROUND_SCALE = 10.0 ** 5  # round_param = 5 in the PyTorch module

# Approximate live bytes per element of the (Lk, Lk) pairwise-equality working
# set (bool compare + f32 cast coexist).
_EQ_BYTES_PER_ELEM = 8


def _refined_recip(x):
    """EUP approximate reciprocal + two Newton steps (full f32 accuracy)."""
    r = pl.reciprocal(x, approx=True)
    r = r * (2.0 - x * r)
    r = r * (2.0 - x * r)
    return r


def _row_block(xq, v, out_dtype, attn_dtype, return_attn):
    """Dedup-softmax + PV matmul for a block of query rows.

    xq: (TB, R, Lk) f32 rounded exp values; v: (TB, Lk, Dv).
    Returns (out (TB, R, Dv), attn (TB, R, Lk) or None).
    """
    # Lane-packed pairwise equality: eq[b, q, j, m] = (x_j == x_m).  The minor
    # (128-lane) axis is Lk (m) and the sublane axis is Lk (j) -> full vregs.
    eq = xq[:, :, :, None] == xq[:, :, None, :]            # (TB, R, Lk, Lk)
    counts = jnp.sum(eq.astype(jnp.float32), axis=-1)       # (TB, R, Lk), exact ints
    # sum over DISTINCT row values == sum_j x_j / count_j
    denom = jnp.sum(xq * _refined_recip(counts), axis=-1, keepdims=True)
    inv_denom = _refined_recip(denom)                        # (TB, R, 1)

    if return_attn:
        attn = xq * inv_denom
        out = lax.dot_general(
            attn.astype(v.dtype), v,
            dimension_numbers=(((2,), (1,)), ((0,), (0,))),
            preferred_element_type=jnp.float32)
        return out.astype(out_dtype), attn.astype(attn_dtype)

    # Deferred normalization: scale the (R, Dv) result instead of (R, Lk) attn.
    out = lax.dot_general(
        xq.astype(v.dtype), v,
        dimension_numbers=(((2,), (1,)), ((0,), (0,))),
        preferred_element_type=jnp.float32)
    out = out * inv_denom
    return out.astype(out_dtype), None


def _sdpa_kernel(q_ref, kt_ref, v_ref, mask_ref, out_ref, *rest,
                 temperature, qc, n_qc, return_attn):
    # Block shapes:
    #   q_ref    (TB, TQ, Dk)
    #   kt_ref   (TB, Dk, Lk)   (K pre-transposed in the wrapper)
    #   v_ref    (TB, Lk, Dv)
    #   mask_ref (TBm, TQm, Lk) int32, broadcast inside the kernel
    #   out_ref  (TB, TQ, Dv)
    #   attn_ref (TB, TQ, Lk)   optional output
    #   xexp_ref (TB, TQ, Lk)   f32 scratch (only when n_qc > 1)
    idx = 0
    attn_ref = None
    if return_attn:
        attn_ref = rest[idx]
        idx += 1
    xexp_ref = None
    if n_qc > 1:
        xexp_ref = rest[idx]
        idx += 1

    inv_temp = jnp.asarray(1.0 / temperature, dtype=q_ref.dtype)
    q = q_ref[...] * inv_temp
    scores = lax.dot_general(
        q, kt_ref[...],
        dimension_numbers=(((2,), (1,)), ((0,), (0,))),
        preferred_element_type=jnp.float32)                  # (TB, TQ, Lk)

    scores = jnp.where(mask_ref[...] == 0, jnp.float32(-1.0e9), scores)

    maxes = jnp.max(scores, axis=-1, keepdims=True)
    x_exp = jnp.exp(scores - maxes)
    x_exp = jnp.round(x_exp * ROUND_SCALE) / ROUND_SCALE     # exact multiples of 1e-5

    v = v_ref[...]
    out_dtype = out_ref.dtype
    attn_dtype = attn_ref.dtype if return_attn else jnp.float32

    if n_qc == 1:
        out, attn = _row_block(x_exp, v, out_dtype, attn_dtype, return_attn)
        out_ref[...] = out
        if return_attn:
            attn_ref[...] = attn
    else:
        xexp_ref[...] = x_exp

        def body(c, carry):
            qs = pl.multiple_of(c * qc, qc)
            xq = xexp_ref[:, pl.ds(qs, qc), :]                # (TB, QC, Lk)
            out_q, attn_q = _row_block(xq, v, out_dtype, attn_dtype, return_attn)
            out_ref[:, pl.ds(qs, qc), :] = out_q
            if return_attn:
                attn_ref[:, pl.ds(qs, qc), :] = attn_q
            return carry

        lax.fori_loop(0, n_qc, body, 0)
    # TODO(synk): nn.Dropout(p=0.1) omitted -- eval-mode (identity) semantics.


def _largest_divisor_leq(n, cap):
    for d in range(min(n, cap), 0, -1):
        if n % d == 0:
            return d
    return 1


def _vmem_capacity_bytes():
    try:
        info = pltpu.get_tpu_info()
        cap = getattr(info, "vmem_capacity_bytes", None)
        if cap:
            return int(cap)
    except Exception:
        pass
    return 64 * 1024 * 1024  # conservative (v7x-sized) fallback


def _choose_tiles(BH, Lq, Lk, Dk, Dv, itemsize, q_chunk=None):
    vmem_cap = _vmem_capacity_bytes()
    if vmem_cap >= 96 * 1024 * 1024:          # v5e / v6e: 128 MiB physical VMEM
        eq_budget = 28 * 1024 * 1024
        vmem_ceiling = 100 * 1024 * 1024
    else:                                     # v7x: 64 MiB physical VMEM
        eq_budget = 10 * 1024 * 1024
        vmem_ceiling = 48 * 1024 * 1024

    # Query tile (full when small; multiple of 8 otherwise).
    TQ = Lq if Lq <= 128 else 128

    # Heads batched per grid step, bounded by a K^T/V double-buffer budget.
    TB = _largest_divisor_leq(BH, 8)
    kv_budget = 16 * 1024 * 1024
    while TB > 1 and 2 * TB * Lk * (Dk + Dv) * itemsize > kv_budget:
        TB = _largest_divisor_leq(BH, TB - 1)
    # v7x megacore: guarantee >= 2 steps along a parallel grid axis if possible.
    if (BH // TB) * pl.cdiv(Lq, TQ) < 2 and BH >= 2:
        TB = _largest_divisor_leq(BH, max(1, BH // 2))

    # Query sub-chunk so the lane-packed (TB, QC, Lk, Lk) compare fits VMEM.
    per_row = TB * Lk * Lk * _EQ_BYTES_PER_ELEM
    if q_chunk is not None:
        QC = max(1, min(int(q_chunk), TQ))
        while TQ % QC:
            QC -= 1
    elif per_row * TQ <= eq_budget:
        QC = TQ
    else:
        divs = [d for d in range(TQ, 0, -1) if TQ % d == 0]
        fit = [d for d in divs if per_row * d <= eq_budget]
        mult8 = [d for d in fit if d % 8 == 0]
        QC = mult8[0] if mult8 else (fit[0] if fit else 1)
    n_qc = TQ // QC
    return TB, TQ, QC, n_qc, vmem_ceiling


def scaled_dot_product_attention(q, k, v, temperature, mask=None,
                                 return_attn=True, q_chunk=None):
    """q:(B,H,Lq,Dk)  k:(B,H,Lk,Dk)  v:(B,H,Lk,Dv)  mask broadcastable to (B,H,Lq,Lk)."""
    B, H, Lq, Dk = q.shape
    Lk = k.shape[2]
    Dv = v.shape[3]
    BH = B * H

    qf = q.reshape(BH, Lq, Dk)
    ktf = jnp.swapaxes(k.reshape(BH, Lk, Dk), 1, 2)          # (BH, Dk, Lk)
    vf = v.reshape(BH, Lk, Dv)

    # Mask: keep (close to) its original broadcast shape, never materialized to
    # (BH, Lq, Lk) in HBM.
    if mask is None:
        mask3 = jnp.ones((1, 1, Lk), jnp.int32)
    else:
        m4 = (mask != 0).astype(jnp.int32)
        m4 = m4.reshape((1,) * (4 - m4.ndim) + m4.shape)
        if m4.shape[3] != Lk:
            m4 = jnp.broadcast_to(m4, m4.shape[:3] + (Lk,))
        if m4.shape[0] == 1 and m4.shape[1] == 1:
            mask3 = m4.reshape(1, m4.shape[2], Lk)
        else:
            mask3 = jnp.broadcast_to(m4, (B, H, m4.shape[2], Lk)).reshape(BH, m4.shape[2], Lk)
    BHm, Lqm, _ = mask3.shape

    isz = q.dtype.itemsize
    TB, TQ, QC, n_qc, vmem_ceiling = _choose_tiles(BH, Lq, Lk, Dk, Dv, isz, q_chunk=q_chunk)
    grid = (BH // TB, pl.cdiv(Lq, TQ))

    mask_bh = (BHm == BH)
    mask_q = (Lqm == Lq)
    TBm = TB if mask_bh else 1
    TQm = TQ if mask_q else 1

    in_specs = [
        pl.BlockSpec((TB, TQ, Dk), lambda i, j: (i, j, 0)),
        pl.BlockSpec((TB, Dk, Lk), lambda i, j: (i, 0, 0)),
        pl.BlockSpec((TB, Lk, Dv), lambda i, j: (i, 0, 0)),
        pl.BlockSpec((TBm, TQm, Lk),
                     lambda i, j: (i if mask_bh else 0, j if mask_q else 0, 0)),
    ]

    out_dtype = q.dtype
    out_shapes = [jax.ShapeDtypeStruct((BH, Lq, Dv), out_dtype)]
    out_specs = [pl.BlockSpec((TB, TQ, Dv), lambda i, j: (i, j, 0))]
    if return_attn:
        out_shapes.append(jax.ShapeDtypeStruct((BH, Lq, Lk), jnp.float32))
        out_specs.append(pl.BlockSpec((TB, TQ, Lk), lambda i, j: (i, j, 0)))

    scratch_shapes = []
    if n_qc > 1:
        scratch_shapes.append(pltpu.VMEM((TB, TQ, Lk), jnp.float32))

    # Honest VMEM budget: double-buffered blocks + dedup working set + margin.
    block_bytes = 2 * (TB * TQ * Dk * isz + TB * Dk * Lk * isz + TB * Lk * Dv * isz
                       + TBm * TQm * Lk * 4 + TB * TQ * Dv * out_dtype.itemsize
                       + (TB * TQ * Lk * 4 if return_attn else 0))
    working = (TB * QC * Lk * Lk * _EQ_BYTES_PER_ELEM
               + 6 * TB * TQ * Lk * 4
               + (TB * TQ * Lk * 4 if n_qc > 1 else 0))
    vmem_limit = int(min(vmem_ceiling,
                         max(32 * 1024 * 1024, block_bytes + working + (4 << 20))))

    kernel = functools.partial(_sdpa_kernel, temperature=float(temperature),
                               qc=QC, n_qc=n_qc, return_attn=return_attn)

    outs = pl.pallas_call(
        kernel,
        out_shape=tuple(out_shapes),
        grid_spec=pltpu.PrefetchScalarGridSpec(
            num_scalar_prefetch=0,
            grid=grid,
            in_specs=in_specs,
            out_specs=out_specs,
            scratch_shapes=tuple(scratch_shapes),
        ),
        compiler_params=pltpu.CompilerParams(
            dimension_semantics=("parallel", "parallel"),
            vmem_limit_bytes=vmem_limit,
        ),
    )(qf, ktf, vf, mask3)

    if return_attn:
        out, attn = outs
        return out.reshape(B, H, Lq, Dv), attn.reshape(B, H, Lq, Lk)
    out = outs[0] if isinstance(outs, (list, tuple)) else outs
    return out.reshape(B, H, Lq, Dv), None


def _reference(q, k, v, temperature, mask=None):
    """Pure-JAX mirror of the PyTorch forward (sort-based dedup), eval-mode dropout."""
    attn = jnp.matmul(q / temperature, jnp.swapaxes(k, -1, -2))
    if mask is not None:
        attn = jnp.where(mask == 0, -1.0e9, attn)
    maxes = jnp.max(attn, axis=-1, keepdims=True)
    x_exp = jnp.round(jnp.exp(attn - maxes) * ROUND_SCALE) / ROUND_SCALE
    y = jnp.sort(x_exp, axis=-1)
    keep = jnp.concatenate(
        [jnp.ones_like(y[..., :1]), (y[..., 1:] - y[..., :-1] != 0).astype(y.dtype)],
        axis=-1,
    )
    denom = jnp.sum(y * keep, axis=-1, keepdims=True)
    attn = x_exp / denom
    return jnp.matmul(attn, v), attn


if __name__ == "__main__":
    key = jax.random.PRNGKey(0)
    kq, kk, kv = jax.random.split(key, 3)

    B, H, Lq, Lk, Dk, Dv = 2, 2, 8, 8, 16, 16
    temperature = float(Dk) ** 0.5

    q = jax.random.normal(kq, (B, H, Lq, Dk), jnp.float32)
    k = jax.random.normal(kk, (B, H, Lk, Dk), jnp.float32)
    v = jax.random.normal(kv, (B, H, Lk, Dv), jnp.float32)
    # mask out the last two key positions (broadcast over heads / queries)
    mask = (jnp.arange(Lk) < Lk - 2).astype(jnp.float32).reshape(1, 1, 1, Lk)
    mask = jnp.broadcast_to(mask, (B, 1, 1, Lk))

    ref_out, ref_attn = _reference(q, k, v, temperature, mask=mask)

    # 1) default path (whole query tile processed in one shot)
    out, attn = scaled_dot_product_attention(q, k, v, temperature, mask=mask)
    out = jax.block_until_ready(out)
    attn = jax.block_until_ready(attn)
    assert jnp.allclose(attn, ref_attn, rtol=1e-5, atol=1e-5), "attn mismatch"
    assert jnp.allclose(out, ref_out, rtol=1e-5, atol=1e-5), "output mismatch"

    # 2) reduced-writeback path (no attn output, deferred normalization)
    out_only, _ = scaled_dot_product_attention(q, k, v, temperature, mask=mask,
                                               return_attn=False)
    out_only = jax.block_until_ready(out_only)
    assert jnp.allclose(out_only, ref_out, rtol=1e-5, atol=1e-5), "output mismatch (no attn)"

    # 3) forced query sub-chunk loop (exercises the scratch + fori_loop path)
    out_c, attn_c = scaled_dot_product_attention(q, k, v, temperature, mask=mask,
                                                 q_chunk=4)
    out_c = jax.block_until_ready(out_c)
    attn_c = jax.block_until_ready(attn_c)
    assert jnp.allclose(attn_c, ref_attn, rtol=1e-5, atol=1e-5), "attn mismatch (chunked)"
    assert jnp.allclose(out_c, ref_out, rtol=1e-5, atol=1e-5), "output mismatch (chunked)"

    print("KERNEL_OK")
</pallas_src>

<mosaic_0001>
module attributes {stable_mosaic.version = 11 : i64} {
  func.func @_sdpa_kernel(%arg0: i32, %arg1: i32, %arg2: memref<2x8x16xf32, #tpu.memory_space<vmem>>, %arg3: memref<2x16x8xf32, #tpu.memory_space<vmem>>, %arg4: memref<2x8x16xf32, #tpu.memory_space<vmem>>, %arg5: memref<2x1x8xi32, #tpu.memory_space<vmem>>, %arg6: memref<2x8x16xf32, #tpu.memory_space<vmem>>, %arg7: memref<2x8x8xf32, #tpu.memory_space<vmem>>) attributes {dimension_semantics = [#tpu.dimension_semantics<parallel>, #tpu.dimension_semantics<parallel>], iteration_bounds = array<i64: 2, 1>, scalar_prefetch = 0 : i64, scratch_operands = 0 : i64, tpu.core_type = #tpu.core_type<tc>, window_params = [{transform_indices = @transform_0, window_bounds = array<i64: 2, 8, 16>}, {transform_indices = @transform_1, window_bounds = array<i64: 2, 16, 8>}, {transform_indices = @transform_2, window_bounds = array<i64: 2, 8, 16>}, {transform_indices = @transform_3, window_bounds = array<i64: 2, 1, 8>}, {transform_indices = @transform_4, window_bounds = array<i64: 2, 8, 16>}, {transform_indices = @transform_5, window_bounds = array<i64: 2, 8, 8>}]} {
    %c0 = arith.constant 0 : index
    %c0_0 = arith.constant 0 : index
    %c0_1 = arith.constant 0 : index
    %0 = vector.load %arg2[%c0, %c0_0, %c0_1] : memref<2x8x16xf32, #tpu.memory_space<vmem>>, vector<2x8x16xf32>
    %cst = arith.constant 2.500000e-01 : f32
    %1 = vector.broadcast %cst : f32 to vector<2x8x16xf32>
    %2 = arith.mulf %0, %1 : vector<2x8x16xf32>
    %c0_2 = arith.constant 0 : index
    %c0_3 = arith.constant 0 : index
    %c0_4 = arith.constant 0 : index
    %3 = vector.load %arg3[%c0_2, %c0_3, %c0_4] : memref<2x16x8xf32, #tpu.memory_space<vmem>>, vector<2x16x8xf32>
    %cst_5 = arith.constant dense<0.000000e+00> : vector<2x8x8xf32>
    %4 = tpu.matmul %2, %3, %cst_5 {dimension_numbers = #tpu.dot_dimension_numbers<[2], [1], [1], [2], [0, 0, 0, 1, 1, 2], [0], [0]>} : vector<2x8x16xf32>, vector<2x16x8xf32>, vector<2x8x8xf32> -> vector<2x8x8xf32>
    %c0_6 = arith.constant 0 : index
    %c0_7 = arith.constant 0 : index
    %c0_8 = arith.constant 0 : index
    %5 = vector.load %arg5[%c0_6, %c0_7, %c0_8] : memref<2x1x8xi32, #tpu.memory_space<vmem>>, vector<2x1x8xi32>
    %c0_i32 = arith.constant 0 : i32
    %6 = vector.broadcast %c0_i32 : i32 to vector<2x1x8xi32>
    %7 = arith.cmpi eq, %5, %6 : vector<2x1x8xi32>
    %cst_9 = arith.constant -1.000000e+09 : f32
    %8 = vector.shape_cast %7 : vector<2x1x8xi1> to vector<2x1x8xi1>
    %9 = vector.broadcast %8 : vector<2x1x8xi1> to vector<2x8x8xi1>
    %10 = vector.broadcast %cst_9 : f32 to vector<2x8x8xf32>
    %11 = arith.select %9, %10, %4 : vector<2x8x8xi1>, vector<2x8x8xf32>
    %cst_10 = arith.constant dense<0xFF800000> : vector<2x8xf32>
    %12 = vector.multi_reduction <maximumf>, %11, %cst_10 [2] : vector<2x8x8xf32> to vector<2x8xf32>
    %13 = vector.shape_cast %12 : vector<2x8xf32> to vector<2x8x1xf32>
    %14 = vector.broadcast %13 : vector<2x8x1xf32> to vector<2x8x8xf32>
    %15 = arith.subf %11, %14 : vector<2x8x8xf32>
    %16 = math.exp %15 : vector<2x8x8xf32>
    %cst_11 = arith.constant 1.000000e+05 : f32
    %17 = vector.broadcast %cst_11 : f32 to vector<2x8x8xf32>
    %18 = arith.mulf %16, %17 : vector<2x8x8xf32>
    %19 = math.roundeven %18 : vector<2x8x8xf32>
    %cst_12 = arith.constant 1.000000e+05 : f32
    %20 = vector.broadcast %cst_12 : f32 to vector<2x8x8xf32>
    %21 = arith.divf %19, %20 : vector<2x8x8xf32>
    %c0_13 = arith.constant 0 : index
    %c0_14 = arith.constant 0 : index
    %c0_15 = arith.constant 0 : index
    %22 = vector.load %arg4[%c0_13, %c0_14, %c0_15] : memref<2x8x16xf32, #tpu.memory_space<vmem>>, vector<2x8x16xf32>
    %23 = vector.shape_cast %21 : vector<2x8x8xf32> to vector<2x8x8x1xf32>
    %24 = vector.shape_cast %21 : vector<2x8x8xf32> to vector<2x8x1x8xf32>
    %25 = vector.broadcast %23 : vector<2x8x8x1xf32> to vector<2x8x8x8xf32>
    %26 = vector.broadcast %24 : vector<2x8x1x8xf32> to vector<2x8x8x8xf32>
    %27 = arith.cmpf oeq, %25, %26 : vector<2x8x8x8xf32>
    %28 = arith.extui %27 : vector<2x8x8x8xi1> to vector<2x8x8x8xi32>
    %29 = arith.sitofp %28 : vector<2x8x8x8xi32> to vector<2x8x8x8xf32>
    %cst_16 = arith.constant dense<0.000000e+00> : vector<2x8x8xf32>
    %30 = vector.multi_reduction <add>, %29, %cst_16 [3] : vector<2x8x8x8xf32> to vector<2x8x8xf32>
    %31 = tpu.reciprocal %30 {approx = true} : vector<2x8x8xf32> -> vector<2x8x8xf32>
    %32 = arith.mulf %30, %31 : vector<2x8x8xf32>
    %cst_17 = arith.constant 2.000000e+00 : f32
    %33 = vector.broadcast %cst_17 : f32 to vector<2x8x8xf32>
    %34 = arith.subf %33, %32 : vector<2x8x8xf32>
    %35 = arith.mulf %31, %34 : vector<2x8x8xf32>
    %36 = arith.mulf %30, %35 : vector<2x8x8xf32>
    %cst_18 = arith.constant 2.000000e+00 : f32
    %37 = vector.broadcast %cst_18 : f32 to vector<2x8x8xf32>
    %38 = arith.subf %37, %36 : vector<2x8x8xf32>
    %39 = arith.mulf %35, %38 : vector<2x8x8xf32>
    %40 = arith.mulf %21, %39 : vector<2x8x8xf32>
    %cst_19 = arith.constant dense<0.000000e+00> : vector<2x8xf32>
    %41 = vector.multi_reduction <add>, %40, %cst_19 [2] : vector<2x8x8xf32> to vector<2x8xf32>
    %42 = vector.shape_cast %41 : vector<2x8xf32> to vector<2x8x1xf32>
    %43 = tpu.reciprocal %42 {approx = true} : vector<2x8x1xf32> -> vector<2x8x1xf32>
    %44 = arith.mulf %42, %43 : vector<2x8x1xf32>
    %cst_20 = arith.constant 2.000000e+00 : f32
    %45 = vector.broadcast %cst_20 : f32 to vector<2x8x1xf32>
    %46 = arith.subf %45, %44 : vector<2x8x1xf32>
    %47 = arith.mulf %43, %46 : vector<2x8x1xf32>
    %48 = arith.mulf %42, %47 : vector<2x8x1xf32>
    %cst_21 = arith.constant 2.000000e+00 : f32
    %49 = vector.broadcast %cst_21 : f32 to vector<2x8x1xf32>
    %50 = arith.subf %49, %48 : vector<2x8x1xf32>
    %51 = arith.mulf %47, %50 : vector<2x8x1xf32>
    %52 = vector.broadcast %51 : vector<2x8x1xf32> to vector<2x8x8xf32>
    %53 = arith.mulf %21, %52 : vector<2x8x8xf32>
    %cst_22 = arith.constant dense<0.000000e+00> : vector<2x8x16xf32>
    %54 = tpu.matmul %53, %22, %cst_22 {dimension_numbers = #tpu.dot_dimension_numbers<[2], [1], [1], [2], [0, 0, 0, 1, 1, 2], [0], [0]>} : vector<2x8x8xf32>, vector<2x8x16xf32>, vector<2x8x16xf32> -> vector<2x8x16xf32>
    %c0_23 = arith.constant 0 : index
    %c0_24 = arith.constant 0 : index
    %c0_25 = arith.constant 0 : index
    %55 = vector.load %arg6[%c0_23, %c0_24, %c0_25] : memref<2x8x16xf32, #tpu.memory_space<vmem>>, vector<2x8x16xf32>
    tpu.vector_store %arg6[%c0_23, %c0_24, %c0_25], %54 {strides = array<i32>} : memref<2x8x16xf32, #tpu.memory_space<vmem>>, vector<2x8x16xf32>,
    %c0_26 = arith.constant 0 : index
    %c0_27 = arith.constant 0 : index
    %c0_28 = arith.constant 0 : index
    %56 = vector.load %arg7[%c0_26, %c0_27, %c0_28] : memref<2x8x8xf32, #tpu.memory_space<vmem>>, vector<2x8x8xf32>
    tpu.vector_store %arg7[%c0_26, %c0_27, %c0_28], %53 {strides = array<i32>} : memref<2x8x8xf32, #tpu.memory_space<vmem>>, vector<2x8x8xf32>,
    return
  }
  func.func @transform_0(%arg0: i32, %arg1: i32) -> (i32, i32, i32) {
    %c0_i32 = arith.constant 0 : i32
    %c0_i32_0 = arith.constant 0 : i32
    return %arg0, %arg1, %c0_i32 : i32, i32, i32
  }
  func.func @transform_1(%arg0: i32, %arg1: i32) -> (i32, i32, i32) {
    %c0_i32 = arith.constant 0 : i32
    %c0_i32_0 = arith.constant 0 : i32
    %c0_i32_1 = arith.constant 0 : i32
    return %arg0, %c0_i32, %c0_i32_0 : i32, i32, i32
  }
  func.func @transform_2(%arg0: i32, %arg1: i32) -> (i32, i32, i32) {
    %c0_i32 = arith.constant 0 : i32
    %c0_i32_0 = arith.constant 0 : i32
    %c0_i32_1 = arith.constant 0 : i32
    return %arg0, %c0_i32, %c0_i32_0 : i32, i32, i32
  }
  func.func @transform_3(%arg0: i32, %arg1: i32) -> (i32, i32, i32) {
    %c0_i32 = arith.constant 0 : i32
    %c0_i32_0 = arith.constant 0 : i32
    %c0_i32_1 = arith.constant 0 : i32
    return %arg0, %c0_i32, %c0_i32_0 : i32, i32, i32
  }
  func.func @transform_4(%arg0: i32, %arg1: i32) -> (i32, i32, i32) {
    %c0_i32 = arith.constant 0 : i32
    %c0_i32_0 = arith.constant 0 : i32
    return %arg0, %arg1, %c0_i32 : i32, i32, i32
  }
  func.func @transform_5(%arg0: i32, %arg1: i32) -> (i32, i32, i32) {
    %c0_i32 = arith.constant 0 : i32
    %c0_i32_0 = arith.constant 0 : i32
    return %arg0, %arg1, %c0_i32 : i32, i32, i32
  }
}

</mosaic_0001>

<llo_original>
// kernel: tpu_custom_call.1
$region0: #{tpu_custom_call.1}
  #allocation0 [shape = 'u32[]', space=smem, size = 0x4, offset = 0x4, fixed_abs, tag = 'smem constant byte address 0x4 - core index']
  #allocation1 [shape = 'u32[144,128]{1,0:T(1,128)}', space=vmem, size = 0x12000, scoped, tag = 'internal scratch']
  %s0 = inlined_call_operand.vmem [shape: f32[4,8,16], index: 0, kind: input, shape index: {}]
  %s1 = inlined_call_operand.vmem [shape: f32[4,16,8], index: 1, kind: input, shape index: {}]
  %s2 = inlined_call_operand.vmem [shape: f32[4,8,16], index: 2, kind: input, shape index: {}]
  %s3 = inlined_call_operand.vmem [shape: s32[4,1,8], index: 3, kind: input, shape index: {}]
  %s4 = inlined_call_operand.hbm [shape: f32[4,8,16], index: 4, kind: output, shape index: {0}]
  %s5 = inlined_call_operand.hbm [shape: f32[4,8,8], index: 5, kind: output, shape index: {1}]
  %6 = xla_tuple %s4, %s5
  %s7 = sld [smem:[#allocation0]]
  $region57: #{tpu_custom_call.1} parent=0
    _
  %s9 = ssub.s32 1, %s7
  %s10 = scalar_select 0, %s9, %s7
  $region1: #{tpu_custom_call.1} parent=0
    #allocation2 [shape = 'u8[16384]{0}', space=vmem, size = 0x4000, scoped, tag = 'output window, operand 0']
    #allocation3 [shape = 's32[2]{0}', space=sflag, size = 0x8, scoped, tag = 'scoped memory for tpu_custom_call.1']
    #allocation4 [shape = 'u8[16384]{0}', space=vmem, size = 0x4000, scoped, tag = 'output window, operand 1']
    #allocation5 [shape = 's32[2]{0}', space=sflag, size = 0x8, scoped, tag = 'scoped memory for tpu_custom_call.1']
    %11 = vsyncpa [#allocation3], 0
    %s12 = scalar_lea.sflag [#allocation3], 1
    %13 = vsyncpa %s12, 0
    %14 = vsyncpa [#allocation5], 0
    %s15 = scalar_lea.sflag [#allocation5], 1
    %16 = vsyncpa %s15, 0
    loop: start=0, step=1, limit=4
    $region2: #{tpu_custom_call.1} parent=1 // loop_pre_header
      _
    $region3: #{tpu_custom_call.1} parent=1 // loop_header
      %s18 = sphi 0, %s22
      %p19 = scmp.ge.s32.totalorder %s18, 4
      %s25 = sphi 0, %s37
      %s26 = sphi 0, %s33
      %s27 = sphi 0, %s25
      %s28 = sphi 0, %s26
      %s29 = sphi 0, %s27
      %s30 = sphi 0, %s28
      %s42 = sphi 0, %s44
      %s45 = sphi 0, %s42
      %s46 = sphi 0, %s45
      %s62 = sphi 0, %s46
      %s68 = sphi 0, %s70
      %s71 = sphi 0, %s68
      %s72 = sphi 0, %s71
      %s88 = sphi 0, %s72
      %s94 = sphi 0, %s96
      %s97 = sphi 0, %s94
      %s98 = sphi 0, %s97
      %s114 = sphi 0, %s98
      %s120 = sphi 0, %s122
      %s123 = sphi 0, %s120
      %s124 = sphi 0, %s123
      %s140 = sphi 0, %s124
      %s148 = sphi 0, %s150
      %s151 = sphi 0, %s148
      %s152 = sphi 0, %s151
      %s168 = sphi 0, %s152
      %s176 = sphi 0, %s178
      %s179 = sphi 0, %s176
      %s180 = sphi 0, %s179
      %s196 = sphi 0, %s180
    $region4: #{tpu_custom_call.1} parent=1 // loop_header_branch
      %21 = sbr.rel (%p19) target = $region8
    $region5: #{tpu_custom_call.1} parent=1 // loop_body
      %s23 = ssub.s32 %s18, 1
      %s24 = ssub.s32 %s18, 2
      %s31 = sadd.s32 1, %s26
      %p32 = scmp.ge.s32.totalorder %s31, 1
      %s33 = scalar_select %p32, 0, %s31
      %s34 = sadd.s32 1, %s25
      %s35 = scalar_select %p32, %s34, %s25
      %p36 = scmp.ge.s32.totalorder %s35, 2
      %s37 = scalar_select %p36, 0, %s35
      %s38 = ssub.s32 %s25, %s37
      %s39 = ssub.s32 %s26, %s33
      %s40 = sor.u32 %s38, %s39
      %p41 = scmp.eq.s32.totalorder %s40, 0
      %s43 = sadd.s32 %s42, 1
      %s44 = scalar_select %p41, %s42, %s43
      %p47 = pneg %p41
      %p48 = scmp.eq.s32.totalorder %s18, 1
      %p49 = por %p47, %p48
      %p50 = scmp.ne.s32.totalorder %s42, %s45
      %p51 = scmp.eq.s32.totalorder %s18, 0
      %p52 = por %p50, %p51
      %p53 = scmp.ne.s32.totalorder %s42, %s45
      %p54 = scmp.eq.s32.totalorder %s23, 1
      %p55 = por %p53, %p54
      %p56 = scmp.ne.s32.totalorder %s45, %s46
      %p57 = scmp.eq.s32.totalorder %s23, 0
      %p58 = por %p56, %p57
      %p59 = scmp.ne.s32.totalorder %s45, %s46
      %p60 = scmp.eq.s32.totalorder %s24, 1
      %p61 = por %p59, %p60
      %p63 = scmp.ne.s32.totalorder %s46, %s62
      %p64 = scmp.eq.s32.totalorder %s24, 0
      %p65 = por %p63, %p64
      %s66 = ssub.s32 %s25, %s37
      %p67 = scmp.eq.s32.totalorder %s66, 0
      %s69 = sadd.s32 %s68, 1
      %s70 = scalar_select %p67, %s68, %s69
      %p73 = pneg %p67
      %p74 = scmp.eq.s32.totalorder %s18, 1
      %p75 = por %p73, %p74
      %p76 = scmp.ne.s32.totalorder %s68, %s71
      %p77 = scmp.eq.s32.totalorder %s18, 0
      %p78 = por %p76, %p77
      %p79 = scmp.ne.s32.totalorder %s68, %s71
      %p80 = scmp.eq.s32.totalorder %s23, 1
      %p81 = por %p79, %p80
      %p82 = scmp.ne.s32.totalorder %s71, %s72
      %p83 = scmp.eq.s32.totalorder %s23, 0
      %p84 = por %p82, %p83
      %p85 = scmp.ne.s32.totalorder %s71, %s72
      %p86 = scmp.eq.s32.totalorder %s24, 1
      %p87 = por %p85, %p86
      %p89 = scmp.ne.s32.totalorder %s72, %s88
      %p90 = scmp.eq.s32.totalorder %s24, 0
      %p91 = por %p89, %p90
      %s92 = ssub.s32 %s25, %s37
      %p93 = scmp.eq.s32.totalorder %s92, 0
      %s95 = sadd.s32 %s94, 1
      %s96 = scalar_select %p93, %s94, %s95
      %p99 = pneg %p93
      %p100 = scmp.eq.s32.totalorder %s18, 1
      %p101 = por %p99, %p100
      %p102 = scmp.ne.s32.totalorder %s94, %s97
      %p103 = scmp.eq.s32.totalorder %s18, 0
      %p104 = por %p102, %p103
      %p105 = scmp.ne.s32.totalorder %s94, %s97
      %p106 = scmp.eq.s32.totalorder %s23, 1
      %p107 = por %p105, %p106
      %p108 = scmp.ne.s32.totalorder %s97, %s98
      %p109 = scmp.eq.s32.totalorder %s23, 0
      %p110 = por %p108, %p109
      %p111 = scmp.ne.s32.totalorder %s97, %s98
      %p112 = scmp.eq.s32.totalorder %s24, 1
      %p113 = por %p111, %p112
      %p115 = scmp.ne.s32.totalorder %s98, %s114
      %p116 = scmp.eq.s32.totalorder %s24, 0
      %p117 = por %p115, %p116
      %s118 = ssub.s32 %s25, %s37
      %p119 = scmp.eq.s32.totalorder %s118, 0
      %s121 = sadd.s32 %s120, 1
      %s122 = scalar_select %p119, %s120, %s121
      %p125 = pneg %p119
      %p126 = scmp.eq.s32.totalorder %s18, 1
      %p127 = por %p125, %p126
      %p128 = scmp.ne.s32.totalorder %s120, %s123
      %p129 = scmp.eq.s32.totalorder %s18, 0
      %p130 = por %p128, %p129
      %p131 = scmp.ne.s32.totalorder %s120, %s123
      %p132 = scmp.eq.s32.totalorder %s23, 1
      %p133 = por %p131, %p132
      %p134 = scmp.ne.s32.totalorder %s123, %s124
      %p135 = scmp.eq.s32.totalorder %s23, 0
      %p136 = por %p134, %p135
      %p137 = scmp.ne.s32.totalorder %s123, %s124
      %p138 = scmp.eq.s32.totalorder %s24, 1
      %p139 = por %p137, %p138
      %p141 = scmp.ne.s32.totalorder %s124, %s140
      %p142 = scmp.eq.s32.totalorder %s24, 0
      %p143 = por %p141, %p142
      %s144 = ssub.s32 %s25, %s37
      %s145 = ssub.s32 %s26, %s33
      %s146 = sor.u32 %s144, %s145
      %p147 = scmp.eq.s32.totalorder %s146, 0
      %s149 = sadd.s32 %s148, 1
      %s150 = scalar_select %p147, %s148, %s149
      %p153 = pneg %p147
      %p154 = scmp.eq.s32.totalorder %s18, 1
      %p155 = por %p153, %p154
      %p156 = scmp.ne.s32.totalorder %s148, %s151
      %p157 = scmp.eq.s32.totalorder %s18, 0
      %p158 = por %p156, %p157
      %p159 = scmp.ne.s32.totalorder %s148, %s151
      %p160 = scmp.eq.s32.totalorder %s23, 1
      %p161 = por %p159, %p160
      %p162 = scmp.ne.s32.totalorder %s151, %s152
      %p163 = scmp.eq.s32.totalorder %s23, 0
      %p164 = por %p162, %p163
      %p165 = scmp.ne.s32.totalorder %s151, %s152
      %p166 = scmp.eq.s32.totalorder %s24, 1
      %p167 = por %p165, %p166
      %p169 = scmp.ne.s32.totalorder %s152, %s168
      %p170 = scmp.eq.s32.totalorder %s24, 0
      %p171 = por %p169, %p170
      %s172 = ssub.s32 %s25, %s37
      %s173 = ssub.s32 %s26, %s33
      %s174 = sor.u32 %s172, %s173
      %p175 = scmp.eq.s32.totalorder %s174, 0
      %s177 = sadd.s32 %s176, 1
      %s178 = scalar_select %p175, %s176, %s177
      %p181 = pneg %p175
      %p182 = scmp.eq.s32.totalorder %s18, 1
      %p183 = por %p181, %p182
      %p184 = scmp.ne.s32.totalorder %s176, %s179
      %p185 = scmp.eq.s32.totalorder %s18, 0
      %p186 = por %p184, %p185
      %p187 = scmp.ne.s32.totalorder %s176, %s179
      %p188 = scmp.eq.s32.totalorder %s23, 1
      %p189 = por %p187, %p188
      %p190 = scmp.ne.s32.totalorder %s179, %s180
      %p191 = scmp.eq.s32.totalorder %s23, 0
      %p192 = por %p190, %p191
      %p193 = scmp.ne.s32.totalorder %s179, %s180
      %p194 = scmp.eq.s32.totalorder %s24, 1
      %p195 = por %p193, %p194
      %p197 = scmp.ne.s32.totalorder %s180, %s196
      %p198 = scmp.eq.s32.totalorder %s24, 0
      %p199 = por %p197, %p198
      %p200 = scmp.le.s32.totalorder 1, %s18
      %p201 = scmp.lt.s32.totalorder %s18, 3
      %p202 = pnand %p200, %p201
      %p203 = pneg %p202
      // Predicated region
      $region9: #{tpu_custom_call.1} parent=5 // pred_check
        _
      $region10: #{tpu_custom_call.1} parent=5 // pred_check_branch
        %205 = sbr.rel (%p202) target = $region12
      $region11: #{tpu_custom_call.1} parent=5 // pred_region
        %s206 = ssub.s32 %s18, 1
      $region12: #{tpu_custom_call.1} parent=5 // pred_fallthru
        _
      %p207 = scmp.lt.s32.totalorder %s18, 2
      // Predicated region
      $region13: #{tpu_custom_call.1} parent=5 // pred_check
        %p208 = pneg %p207
      $region14: #{tpu_custom_call.1} parent=5 // pred_check_branch
        %210 = sbr.rel (%p208) target = $region16
      $region15: #{tpu_custom_call.1} parent=5 // pred_region
        // Predicated region
        $region17: #{tpu_custom_call.1} parent=15 // pred_check
          %p211 = pneg %p52
        $region18: #{tpu_custom_call.1} parent=15 // pred_check_branch
          %213 = sbr.rel (%p211) target = $region20
        $region19: #{tpu_custom_call.1} parent=15 // pred_region
          %s214 = smul.u32 2, %s25
          %p215 = scmp.lt.s32.totalorder %s214, 3
          %s216 = scalar_select %p215, %s214, 3
          %p217 = scmp.lt.s32.totalorder %s26, 0
          %s218 = scalar_select %p217, %s26, 0
          %s219 = sadd.s32 %s218, %s216
          %s220 = smul.addr %s219, 8
          %s221 = scalar_lea.vmem %s0, %s220
          %s222 = smul.u32 2, %s25
        $region20: #{tpu_custom_call.1} parent=15 // pred_fallthru
          _
        // Predicated region
        $region21: #{tpu_custom_call.1} parent=15 // pred_check
          %p223 = pneg %p78
        $region22: #{tpu_custom_call.1} parent=15 // pred_check_branch
          %225 = sbr.rel (%p223) target = $region24
        $region23: #{tpu_custom_call.1} parent=15 // pred_region
          %s226 = smul.u32 2, %s25
          %p227 = scmp.lt.s32.totalorder %s226, 3
          %s228 = scalar_select %p227, %s226, 3
          %s229 = smul.addr %s228, 2
          %s230 = smul.addr %s229, 8
          %s231 = scalar_lea.vmem %s1, %s230
          %s232 = smul.u32 2, %s25
        $region24: #{tpu_custom_call.1} parent=15 // pred_fallthru
          _
        // Predicated region
        $region25: #{tpu_custom_call.1} parent=15 // pred_check
          %p233 = pneg %p104
        $region26: #{tpu_custom_call.1} parent=15 // pred_check_branch
          %235 = sbr.rel (%p233) target = $region28
        $region27: #{tpu_custom_call.1} parent=15 // pred_region
          %s236 = smul.u32 2, %s25
          %p237 = scmp.lt.s32.totalorder %s236, 3
          %s238 = scalar_select %p237, %s236, 3
          %s239 = smul.addr %s238, 8
          %s240 = scalar_lea.vmem %s2, %s239
          %s241 = smul.u32 2, %s25
        $region28: #{tpu_custom_call.1} parent=15 // pred_fallthru
          _
        // Predicated region
        $region29: #{tpu_custom_call.1} parent=15 // pred_check
          %p242 = pneg %p130
        $region30: #{tpu_custom_call.1} parent=15 // pred_check_branch
          %244 = sbr.rel (%p242) target = $region32
        $region31: #{tpu_custom_call.1} parent=15 // pred_region
          %s245 = smul.u32 2, %s25
          %p246 = scmp.lt.s32.totalorder %s245, 3
          %s247 = scalar_select %p246, %s245, 3
          %s248 = scalar_lea.vmem %s3, %s247
          %s249 = smul.u32 2, %s25
        $region32: #{tpu_custom_call.1} parent=15 // pred_fallthru
          _
      $region16: #{tpu_custom_call.1} parent=5 // pred_fallthru
        _
      %p250 = scmp.le.s32.totalorder 1, %s18
      %p251 = scmp.lt.s32.totalorder %s18, 3
      %p252 = pnand %p250, %p251
      %p253 = pneg %p252
      // Predicated region
      $region33: #{tpu_custom_call.1} parent=5 // pred_check
        _
      $region34: #{tpu_custom_call.1} parent=5 // pred_check_branch
        %255 = sbr.rel (%p252) target = $region36
      $region35: #{tpu_custom_call.1} parent=5 // pred_region
        %s256 = ssub.s32 %s18, 1
        %s257 = smul.u32 2, %s27
        %p258 = scmp.lt.s32.totalorder %s257, 3
        %s259 = scalar_select %p258, %s257, 3
        %p260 = scmp.lt.s32.totalorder %s28, 0
        %s261 = scalar_select %p260, %s28, 0
        %s262 = sadd.s32 %s261, %s259
        %s263 = smul.addr %s262, 8
        %s264 = scalar_lea.vmem %s0, %s263
        %p265 = pneg %p58
        %p266 = pneg %p55
        %s267 = smul.u32 2, %s27
        %p268 = scmp.lt.s32.totalorder %s267, 3
        %s269 = scalar_select %p268, %s267, 3
        %s270 = smul.addr %s269, 2
        %s271 = smul.addr %s270, 8
        %s272 = scalar_lea.vmem %s1, %s271
        %p273 = pneg %p84
        %p274 = pneg %p81
        %s275 = smul.u32 2, %s27
        %p276 = scmp.lt.s32.totalorder %s275, 3
        %s277 = scalar_select %p276, %s275, 3
        %s278 = smul.addr %s277, 8
        %s279 = scalar_lea.vmem %s2, %s278
        %p280 = pneg %p110
        %p281 = pneg %p107
        %s282 = smul.u32 2, %s27
        %p283 = scmp.lt.s32.totalorder %s282, 3
        %s284 = scalar_select %p283, %s282, 3
        %s285 = scalar_lea.vmem %s3, %s284
        %p286 = pneg %p136
        %p287 = pneg %p133
        %p288 = pneg %p164
        %p289 = pneg %p161
        %s290 = sand.u32 %s151, 1
        %s291 = scalar_lea.sflag [#allocation3], %s290
        %s292 = sand.u32 %s151, 1
        %s293 = smul.addr %s292, 16
        %s294 = scalar_lea.vmem [#allocation2], %s293
        %p295 = pneg %p192
        %p296 = pneg %p189
        %s297 = sand.u32 %s179, 1
        %s298 = scalar_lea.sflag [#allocation5], %s297
        %s299 = sand.u32 %s179, 1
        %s300 = smul.addr %s299, 16
        %s301 = scalar_lea.vmem [#allocation4], %s300
        %s302 = smul.u32 2, %s27
        %p303 = scmp.lt.s32.totalorder %s302, 3
        %s304 = scalar_select %p303, %s302, 3
        %p305 = scmp.lt.s32.totalorder %s28, 0
        %s306 = scalar_select %p305, %s28, 0
        %s307 = sadd.s32 %s306, %s304
        %s308 = smul.addr %s307, 8
        %s309 = scalar_lea.vmem %s0, %s308
        %s310 = smul.u32 2, %s27
        %s311 = smul.u32 2, %s27
        %p312 = scmp.lt.s32.totalorder %s311, 3
        %s313 = scalar_select %p312, %s311, 3
        %s314 = smul.addr %s313, 2
        %s315 = smul.addr %s314, 8
        %s316 = scalar_lea.vmem %s1, %s315
        %s317 = smul.u32 2, %s27
        %s318 = smul.u32 2, %s27
        %p319 = scmp.lt.s32.totalorder %s318, 3
        %s320 = scalar_select %p319, %s318, 3
        %s321 = smul.addr %s320, 8
        %s322 = scalar_lea.vmem %s2, %s321
        %s323 = smul.u32 2, %s27
        %s324 = smul.u32 2, %s27
        %p325 = scmp.lt.s32.totalorder %s324, 3
        %s326 = scalar_select %p325, %s324, 3
        %s327 = scalar_lea.vmem %s3, %s326
        %s328 = smul.u32 2, %s27
        %s329 = smul.u32 2, %s27
        %s330 = smul.u32 2, %s27
        %v331 = vld [vmem:[%s309] sm:$0xff]
        %v332 = vld [vmem:[%s309 + $0x8] sm:$0xff]
        %v333 = vmul.f32 %v331, 0.25
        %v334 = vmul.f32 %v332, 0.25
        %v335 = vld [vmem:[%s316] sm:$0xff]
        %v336 = vld [vmem:[%s316 + $0x8] sm:$0xff]
        %v337 = vld [vmem:[%s316 + $0x10] sm:$0xff]
        %v338 = vld [vmem:[%s316 + $0x18] sm:$0xff]
        %vm339 = vcmask 130048
        %v341 = vsel %vm339, %v333, 0
        %343 = vmatprep.subr.mxu0 0.0
        %344 = vmatpush1.msra.mxu0 %v335
        %345 = vmatprep.subr.mxu0 0.0
        %346 = vmatpush1.msra.mxu0 %v336
        %347 = vmatprep.subr.mxu0 0.0
        %348 = vmatpush1.msra.mxu0 0.0
        %349 = vmatprep.subr.mxu0 0.0
        %350 = vmatpush1.msra.mxu0 0.0
        %351 = vmatprep.subr.mxu0 0.0
        %352 = vmatpush1.msra.mxu0 0.0
        %353 = vmatprep.subr.mxu0 0.0
        %354 = vmatpush1.msra.mxu0 0.0
        %355 = vmatprep.subr.mxu0 0.0
        %356 = vmatpush1.msra.mxu0 0.0
        %357 = vmatprep.subr.mxu0 0.0
        %358 = vmatpush1.msra.mxu0 0.0
        %359 = vmatprep.subr.mxu0 0.0
        %360 = vmatpush1.msra.mxu0 0.0
        %361 = vmatprep.subr.mxu0 0.0
        %362 = vmatpush1.msra.mxu0 0.0
        %363 = vmatprep.subr.mxu0 0.0
        %364 = vmatpush1.msra.mxu0 0.0
        %365 = vmatprep.subr.mxu0 0.0
        %366 = vmatpush1.msra.mxu0 0.0
        %367 = vmatprep.subr.mxu0 0.0
        %368 = vmatpush1.msra.mxu0 0.0
        %369 = vmatprep.subr.mxu0 0.0
        %370 = vmatpush1.msra.mxu0 0.0
        %371 = vmatprep.subr.mxu0 0.0
        %372 = vmatpush1.msra.mxu0 0.0
        %373 = vmatprep.subr.mxu0 0.0
        %374 = vmatpush1.msra.mxu0 0.0
        %375 = vmatprep.subr.mxu0 0.0
        %376 = vmatpush1.msra.mxu0 0.0
        %377 = vmatprep.subr.mxu0 0.0
        %378 = vmatpush1.msra.mxu0 0.0
        %379 = vmatprep.subr.mxu0 0.0
        %380 = vmatpush1.msra.mxu0 0.0
        %381 = vmatprep.subr.mxu0 0.0
        %382 = vmatpush1.msra.mxu0 0.0
        %383 = vmatprep.subr.mxu0 0.0
        %384 = vmatpush1.msra.mxu0 0.0
        %385 = vmatprep.subr.mxu0 0.0
        %386 = vmatpush1.msra.mxu0 0.0
        %387 = vmatprep.subr.mxu0 0.0
        %388 = vmatpush1.msra.mxu0 0.0
        %389 = vmatprep.subr.mxu0 0.0
        %390 = vmatpush1.msra.mxu0 0.0
        %391 = vmatprep.subr.mxu0 0.0
        %392 = vmatpush1.msra.mxu0 0.0
        %393 = vmatprep.subr.mxu0 0.0
        %394 = vmatpush1.msra.mxu0 0.0
        %395 = vmatprep.subr.mxu0 0.0
        %396 = vmatpush1.msra.mxu0 0.0
        %397 = vmatprep.subr.mxu0 0.0
        %398 = vmatpush1.msra.mxu0 0.0
        %399 = vmatprep.subr.mxu0 0.0
        %400 = vmatpush1.msra.mxu0 0.0
        %401 = vmatprep.subr.mxu0 0.0
        %402 = vmatpush1.msra.mxu0 0.0
        %403 = vmatprep.subr.mxu0 0.0
        %404 = vmatpush1.msra.mxu0 0.0
        %405 = vmatprep.subr.mxu0 0.0
        %406 = vmatpush1.msra.mxu0 0.0
        %407 = vmatprep.mubr.f32.mxu0 0.0
        %408 = vmatmul.mubr.f32.gmra.mrb[0].mxu0 %v341
        %v409 = vpop.f32.mrb[0].mxu0
        %v410 = vadd.f32 0.0, %v409
        %v411 = vpop.f32.mrb[0].mxu0
        %412 = vdwg.mxu0
        %v414 = vsel %vm339, %v334, 0
        %416 = vmatprep.subr.mxu0 0.0
        %417 = vmatpush1.msra.mxu0 %v337
        %418 = vmatprep.subr.mxu0 0.0
        %419 = vmatpush1.msra.mxu0 %v338
        %420 = vmatprep.subr.mxu0 0.0
        %421 = vmatpush1.msra.mxu0 0.0
        %422 = vmatprep.subr.mxu0 0.0
        %423 = vmatpush1.msra.mxu0 0.0
        %424 = vmatprep.subr.mxu0 0.0
        %425 = vmatpush1.msra.mxu0 0.0
        %426 = vmatprep.subr.mxu0 0.0
        %427 = vmatpush1.msra.mxu0 0.0
        %428 = vmatprep.subr.mxu0 0.0
        %429 = vmatpush1.msra.mxu0 0.0
        %430 = vmatprep.subr.mxu0 0.0
        %431 = vmatpush1.msra.mxu0 0.0
        %432 = vmatprep.subr.mxu0 0.0
        %433 = vmatpush1.msra.mxu0 0.0
        %434 = vmatprep.subr.mxu0 0.0
        %435 = vmatpush1.msra.mxu0 0.0
        %436 = vmatprep.subr.mxu0 0.0
        %437 = vmatpush1.msra.mxu0 0.0
        %438 = vmatprep.subr.mxu0 0.0
        %439 = vmatpush1.msra.mxu0 0.0
        %440 = vmatprep.subr.mxu0 0.0
        %441 = vmatpush1.msra.mxu0 0.0
        %442 = vmatprep.subr.mxu0 0.0
        %443 = vmatpush1.msra.mxu0 0.0
        %444 = vmatprep.subr.mxu0 0.0
        %445 = vmatpush1.msra.mxu0 0.0
        %446 = vmatprep.subr.mxu0 0.0
        %447 = vmatpush1.msra.mxu0 0.0
        %448 = vmatprep.subr.mxu0 0.0
        %449 = vmatpush1.msra.mxu0 0.0
        %450 = vmatprep.subr.mxu0 0.0
        %451 = vmatpush1.msra.mxu0 0.0
        %452 = vmatprep.subr.mxu0 0.0
        %453 = vmatpush1.msra.mxu0 0.0
        %454 = vmatprep.subr.mxu0 0.0
        %455 = vmatpush1.msra.mxu0 0.0
        %456 = vmatprep.subr.mxu0 0.0
        %457 = vmatpush1.msra.mxu0 0.0
        %458 = vmatprep.subr.mxu0 0.0
        %459 = vmatpush1.msra.mxu0 0.0
        %460 = vmatprep.subr.mxu0 0.0
        %461 = vmatpush1.msra.mxu0 0.0
        %462 = vmatprep.subr.mxu0 0.0
        %463 = vmatpush1.msra.mxu0 0.0
        %464 = vmatprep.subr.mxu0 0.0
        %465 = vmatpush1.msra.mxu0 0.0
        %466 = vmatprep.subr.mxu0 0.0
        %467 = vmatpush1.msra.mxu0 0.0
        %468 = vmatprep.subr.mxu0 0.0
        %469 = vmatpush1.msra.mxu0 0.0
        %470 = vmatprep.subr.mxu0 0.0
        %471 = vmatpush1.msra.mxu0 0.0
        %472 = vmatprep.subr.mxu0 0.0
        %473 = vmatpush1.msra.mxu0 0.0
        %474 = vmatprep.subr.mxu0 0.0
        %475 = vmatpush1.msra.mxu0 0.0
        %476 = vmatprep.subr.mxu0 0.0
        %477 = vmatpush1.msra.mxu0 0.0
        %478 = vmatprep.subr.mxu0 0.0
        %479 = vmatpush1.msra.mxu0 0.0
        %480 = vmatprep.mubr.f32.mxu0 0.0
        %481 = vmatmul.mubr.f32.gmra.mrb[0].mxu0 %v414
        %v482 = vpop.f32.mrb[0].mxu0
        %v483 = vadd.f32 0.0, %v482
        %v484 = vpop.f32.mrb[0].mxu0
        %485 = vdwg.mxu0
        %v486 = vld [vmem:[%s327] sm:$0x1]
        %v487 = vld [vmem:[%s327 + $0x1] sm:$0x1]
        %vm488 = vcmp.eq.s32.totalorder %v486, 0
        %vm489 = vcmp.eq.s32.totalorder %v487, 0
        %v490 = vsel %vm488, 1, 0
        %v491 = vsel %vm489, 1, 0
        %v492 = vlaneseq
        %v493 = vshrl.u32 %v492, 7
        %v494 = vsub.s32 0, %v493
        %v495 = vrot.slane %v490, %v494
        %v496 = vlaneseq
        %v497 = vshrl.u32 %v496, 7
        %v498 = vsub.s32 0, %v497
        %v499 = vrot.slane %v491, %v498
        %vm500 = vcmp.eq.s32.totalorder %v495, 1
        %vm501 = vcmp.eq.s32.totalorder %v499, 1
        %v502 = vsel %vm500, -1e+09, %v410
        %v503 = vsel %vm501, -1e+09, %v483
        %vm504 = vcmask 64512
        %v505 = vsel %vm504, %v502, -inf
        %506 = vmax.xlane.f32.xlu0 %v505
        %v507 = vpop.xlane.xlu0 %506
        %v508 = vsel %vm504, %v503, -inf
        %509 = vmax.xlane.f32.xlu0 %v508
        %v510 = vpop.xlane.xlu0 %509
        %v511 = vsub.f32 %v502, %v507
        %v512 = vsub.f32 %v503, %v510
        %v513 = vmul.f32 %v511, 1.442695
        %v514 = vpow.pop %v513
        %v515 = vmul.f32 %v512, 1.442695
        %v516 = vpow.pop %v515
        %v517 = vmul.f32 %v514, 100000.0
        %v518 = vmul.f32 %v516, 100000.0
        %v519 = vround.ne.pseudo %v517
        %v520 = vround.ne.pseudo %v518
        %v521 = vrcp.pop 100000.0
        %v522 = vmul.f32 %v519, %v521
        %v523 = vmul.f32 %v520, %v521
        %v524 = vld [vmem:[%s322] sm:$0xff]
        %v525 = vld [vmem:[%s322 + $0x8] sm:$0xff]
        %v526 = vlaneseq
        %v527 = vshrl.u32 %v526, 7
        %v528 = vsub.s32 0, %v527
        %v529 = vrot.slane %v522, %v528
        %531 = vbcast.lane.b32.xlu0 %v529, 256
        %v532 = vpop.permute.xlu0 %531
        %v533 = vlaneseq
        %v534 = vshrl.u32 %v533, 7
        %v535 = vsub.s32 1, %v534
        %v536 = vrot.slane %v522, %v535
        %538 = vbcast.lane.b32.xlu0 %v536, 256
        %v539 = vpop.permute.xlu0 %538
        %v540 = vlaneseq
        %v541 = vshrl.u32 %v540, 7
        %v542 = vsub.s32 2, %v541
        %v543 = vrot.slane %v522, %v542
        %545 = vbcast.lane.b32.xlu0 %v543, 256
        %v546 = vpop.permute.xlu0 %545
        %v547 = vlaneseq
        %v548 = vshrl.u32 %v547, 7
        %v549 = vsub.s32 3, %v548
        %v550 = vrot.slane %v522, %v549
        %552 = vbcast.lane.b32.xlu0 %v550, 256
        %v553 = vpop.permute.xlu0 %552
        %v554 = vlaneseq
        %v555 = vshrl.u32 %v554, 7
        %v556 = vsub.s32 4, %v555
        %v557 = vrot.slane %v522, %v556
        %559 = vbcast.lane.b32.xlu0 %v557, 256
        %v560 = vpop.permute.xlu0 %559
        %v561 = vlaneseq
        %v562 = vshrl.u32 %v561, 7
        %v563 = vsub.s32 5, %v562
        %v564 = vrot.slane %v522, %v563
        %566 = vbcast.lane.b32.xlu0 %v564, 256
        %v567 = vpop.permute.xlu0 %566
        %v568 = vlaneseq
        %v569 = vshrl.u32 %v568, 7
        %v570 = vsub.s32 6, %v569
        %v571 = vrot.slane %v522, %v570
        %573 = vbcast.lane.b32.xlu0 %v571, 256
        %v574 = vpop.permute.xlu0 %573
        %v575 = vlaneseq
        %v576 = vshrl.u32 %v575, 7
        %v577 = vsub.s32 7, %v576
        %v578 = vrot.slane %v522, %v577
        %580 = vbcast.lane.b32.xlu0 %v578, 256
        %v581 = vpop.permute.xlu0 %580
        %v582 = vlaneseq
        %v583 = vshrl.u32 %v582, 7
        %v584 = vsub.s32 0, %v583
        %v585 = vrot.slane %v523, %v584
        %587 = vbcast.lane.b32.xlu0 %v585, 256
        %v588 = vpop.permute.xlu0 %587
        %v589 = vlaneseq
        %v590 = vshrl.u32 %v589, 7
        %v591 = vsub.s32 1, %v590
        %v592 = vrot.slane %v523, %v591
        %594 = vbcast.lane.b32.xlu0 %v592, 256
        %v595 = vpop.permute.xlu0 %594
        %v596 = vlaneseq
        %v597 = vshrl.u32 %v596, 7
        %v598 = vsub.s32 2, %v597
        %v599 = vrot.slane %v523, %v598
        %601 = vbcast.lane.b32.xlu0 %v599, 256
        %v602 = vpop.permute.xlu0 %601
        %v603 = vlaneseq
        %v604 = vshrl.u32 %v603, 7
        %v605 = vsub.s32 3, %v604
        %v606 = vrot.slane %v523, %v605
        %608 = vbcast.lane.b32.xlu0 %v606, 256
        %v609 = vpop.permute.xlu0 %608
        %v610 = vlaneseq
        %v611 = vshrl.u32 %v610, 7
        %v612 = vsub.s32 4, %v611
        %v613 = vrot.slane %v523, %v612
        %615 = vbcast.lane.b32.xlu0 %v613, 256
        %v616 = vpop.permute.xlu0 %615
        %v617 = vlaneseq
        %v618 = vshrl.u32 %v617, 7
        %v619 = vsub.s32 5, %v618
        %v620 = vrot.slane %v523, %v619
        %622 = vbcast.lane.b32.xlu0 %v620, 256
        %v623 = vpop.permute.xlu0 %622
        %v624 = vlaneseq
        %v625 = vshrl.u32 %v624, 7
        %v626 = vsub.s32 6, %v625
        %v627 = vrot.slane %v523, %v626
        %629 = vbcast.lane.b32.xlu0 %v627, 256
        %v630 = vpop.permute.xlu0 %629
        %v631 = vlaneseq
        %v632 = vshrl.u32 %v631, 7
        %v633 = vsub.s32 7, %v632
        %v634 = vrot.slane %v523, %v633
        %636 = vbcast.lane.b32.xlu0 %v634, 256
        %v637 = vpop.permute.xlu0 %636
        %v640 = vcombine.high %v522, %v522
        %v642 = vunpack.c.l.s4 1966171168
        %v643 = vunpack.c.0.s8 %v642
        %v644 = vlaneseq
        %v645 = vshrl.u32 %v644, 7
        %v646 = vsub.s32 %v643, %v645
        %v647 = vrot.slane %v522, %v646
        %v649 = vunpack.c.l.s4 1966171168
        %v650 = vunpack.c.0.s8 %v649
        %v651 = vlaneseq
        %v652 = vshrl.u32 %v651, 7
        %v653 = vsub.s32 %v650, %v652
        %v654 = vrot.slane %v640, %v653
        %v655 = vcombine.high %v647, %v647
        %v656 = vcombine.high %v654, %v654
        %v658 = vunpack.c.l.s4 1966171168
        %v659 = vunpack.c.0.s8 %v658
        %v660 = vlaneseq
        %v661 = vshrl.u32 %v660, 7
        %v662 = vsub.s32 %v659, %v661
        %v663 = vrot.slane %v647, %v662
        %v665 = vunpack.c.l.s4 1966171168
        %v666 = vunpack.c.0.s8 %v665
        %v667 = vlaneseq
        %v668 = vshrl.u32 %v667, 7
        %v669 = vsub.s32 %v666, %v668
        %v670 = vrot.slane %v654, %v669
        %v672 = vunpack.c.l.s4 1966171168
        %v673 = vunpack.c.0.s8 %v672
        %v674 = vlaneseq
        %v675 = vshrl.u32 %v674, 7
        %v676 = vsub.s32 %v673, %v675
        %v677 = vrot.slane %v655, %v676
        %v679 = vunpack.c.l.s4 1966171168
        %v680 = vunpack.c.0.s8 %v679
        %v681 = vlaneseq
        %v682 = vshrl.u32 %v681, 7
        %v683 = vsub.s32 %v680, %v682
        %v684 = vrot.slane %v656, %v683
        %v685 = vcombine.high %v663, %v663
        %v686 = vcombine.high %v670, %v670
        %v687 = vcombine.high %v677, %v677
        %v688 = vcombine.high %v684, %v684
        %v689 = vcombine.high %v523, %v523
        %v691 = vunpack.c.l.s4 1966171168
        %v692 = vunpack.c.0.s8 %v691
        %v693 = vlaneseq
        %v694 = vshrl.u32 %v693, 7
        %v695 = vsub.s32 %v692, %v694
        %v696 = vrot.slane %v523, %v695
        %v698 = vunpack.c.l.s4 1966171168
        %v699 = vunpack.c.0.s8 %v698
        %v700 = vlaneseq
        %v701 = vshrl.u32 %v700, 7
        %v702 = vsub.s32 %v699, %v701
        %v703 = vrot.slane %v689, %v702
        %v704 = vcombine.high %v696, %v696
        %v705 = vcombine.high %v703, %v703
        %v707 = vunpack.c.l.s4 1966171168
        %v708 = vunpack.c.0.s8 %v707
        %v709 = vlaneseq
        %v710 = vshrl.u32 %v709, 7
        %v711 = vsub.s32 %v708, %v710
        %v712 = vrot.slane %v696, %v711
        %v714 = vunpack.c.l.s4 1966171168
        %v715 = vunpack.c.0.s8 %v714
        %v716 = vlaneseq
        %v717 = vshrl.u32 %v716, 7
        %v718 = vsub.s32 %v715, %v717
        %v719 = vrot.slane %v703, %v718
        %v721 = vunpack.c.l.s4 1966171168
        %v722 = vunpack.c.0.s8 %v721
        %v723 = vlaneseq
        %v724 = vshrl.u32 %v723, 7
        %v725 = vsub.s32 %v722, %v724
        %v726 = vrot.slane %v704, %v725
        %v728 = vunpack.c.l.s4 1966171168
        %v729 = vunpack.c.0.s8 %v728
        %v730 = vlaneseq
        %v731 = vshrl.u32 %v730, 7
        %v732 = vsub.s32 %v729, %v731
        %v733 = vrot.slane %v705, %v732
        %v734 = vcombine.high %v712, %v712
        %v735 = vcombine.high %v719, %v719
        %v736 = vcombine.high %v726, %v726
        %v737 = vcombine.high %v733, %v733
        %v738 = vlaneseq
        %v739 = vshrl.u32 %v738, 7
        %v740 = vsub.s32 0, %v739
        %v741 = vrot.slane %v663, %v740
        %v742 = vlaneseq
        %v743 = vshrl.u32 %v742, 7
        %v744 = vsub.s32 0, %v743
        %v745 = vrot.slane %v677, %v744
        %v746 = vlaneseq
        %v747 = vshrl.u32 %v746, 7
        %v748 = vsub.s32 0, %v747
        %v749 = vrot.slane %v685, %v748
        %v750 = vlaneseq
        %v751 = vshrl.u32 %v750, 7
        %v752 = vsub.s32 0, %v751
        %v753 = vrot.slane %v687, %v752
        %v754 = vlaneseq
        %v755 = vshrl.u32 %v754, 7
        %v756 = vsub.s32 0, %v755
        %v757 = vrot.slane %v670, %v756
        %v758 = vlaneseq
        %v759 = vshrl.u32 %v758, 7
        %v760 = vsub.s32 0, %v759
        %v761 = vrot.slane %v684, %v760
        %v762 = vlaneseq
        %v763 = vshrl.u32 %v762, 7
        %v764 = vsub.s32 0, %v763
        %v765 = vrot.slane %v686, %v764
        %v766 = vlaneseq
        %v767 = vshrl.u32 %v766, 7
        %v768 = vsub.s32 0, %v767
        %v769 = vrot.slane %v688, %v768
        %v770 = vlaneseq
        %v771 = vshrl.u32 %v770, 7
        %v772 = vsub.s32 0, %v771
        %v773 = vrot.slane %v712, %v772
        %v774 = vlaneseq
        %v775 = vshrl.u32 %v774, 7
        %v776 = vsub.s32 0, %v775
        %v777 = vrot.slane %v726, %v776
        %v778 = vlaneseq
        %v779 = vshrl.u32 %v778, 7
        %v780 = vsub.s32 0, %v779
        %v781 = vrot.slane %v734, %v780
        %v782 = vlaneseq
        %v783 = vshrl.u32 %v782, 7
        %v784 = vsub.s32 0, %v783
        %v785 = vrot.slane %v736, %v784
        %v786 = vlaneseq
        %v787 = vshrl.u32 %v786, 7
        %v788 = vsub.s32 0, %v787
        %v789 = vrot.slane %v719, %v788
        %v790 = vlaneseq
        %v791 = vshrl.u32 %v790, 7
        %v792 = vsub.s32 0, %v791
        %v793 = vrot.slane %v733, %v792
        %v794 = vlaneseq
        %v795 = vshrl.u32 %v794, 7
        %v796 = vsub.s32 0, %v795
        %v797 = vrot.slane %v735, %v796
        %v798 = vlaneseq
        %v799 = vshrl.u32 %v798, 7
        %v800 = vsub.s32 0, %v799
        %v801 = vrot.slane %v737, %v800
        %vm818 = vcmp.eq.f32.partialorder %v532, %v741
        %vm819 = vcmp.eq.f32.partialorder %v539, %v745
        %vm820 = vcmp.eq.f32.partialorder %v546, %v749
        %vm821 = vcmp.eq.f32.partialorder %v553, %v753
        %vm822 = vcmp.eq.f32.partialorder %v560, %v757
        %vm823 = vcmp.eq.f32.partialorder %v567, %v761
        %vm824 = vcmp.eq.f32.partialorder %v574, %v765
        %vm825 = vcmp.eq.f32.partialorder %v581, %v769
        %vm826 = vcmp.eq.f32.partialorder %v588, %v773
        %vm827 = vcmp.eq.f32.partialorder %v595, %v777
        %vm828 = vcmp.eq.f32.partialorder %v602, %v781
        %vm829 = vcmp.eq.f32.partialorder %v609, %v785
        %vm830 = vcmp.eq.f32.partialorder %v616, %v789
        %vm831 = vcmp.eq.f32.partialorder %v623, %v793
        %vm832 = vcmp.eq.f32.partialorder %v630, %v797
        %vm833 = vcmp.eq.f32.partialorder %v637, %v801
        %v834 = vsel %vm818, 1, 0
        %v835 = vsel %vm819, 1, 0
        %v836 = vsel %vm820, 1, 0
        %v837 = vsel %vm821, 1, 0
        %v838 = vsel %vm822, 1, 0
        %v839 = vsel %vm823, 1, 0
        %v840 = vsel %vm824, 1, 0
        %v841 = vsel %vm825, 1, 0
        %v842 = vsel %vm826, 1, 0
        %v843 = vsel %vm827, 1, 0
        %v844 = vsel %vm828, 1, 0
        %v845 = vsel %vm829, 1, 0
        %v846 = vsel %vm830, 1, 0
        %v847 = vsel %vm831, 1, 0
        %v848 = vsel %vm832, 1, 0
        %v849 = vsel %vm833, 1, 0
        %v850 = vcvt.s32.f32 %v834
        %v851 = vcvt.s32.f32 %v835
        %v852 = vcvt.s32.f32 %v836
        %v853 = vcvt.s32.f32 %v837
        %v854 = vcvt.s32.f32 %v838
        %v855 = vcvt.s32.f32 %v839
        %v856 = vcvt.s32.f32 %v840
        %v857 = vcvt.s32.f32 %v841
        %v858 = vcvt.s32.f32 %v842
        %v859 = vcvt.s32.f32 %v843
        %v860 = vcvt.s32.f32 %v844
        %v861 = vcvt.s32.f32 %v845
        %v862 = vcvt.s32.f32 %v846
        %v863 = vcvt.s32.f32 %v847
        %v864 = vcvt.s32.f32 %v848
        %v865 = vcvt.s32.f32 %v849
        %v866 = vsel %vm504, %v850, 0.0
        %867 = vadd.xlane.f32.xlu0 %v866
        %v868 = vpop.xlane.xlu0 %867
        %v869 = vsel %vm504, %v851, 0.0
        %870 = vadd.xlane.f32.xlu0 %v869
        %v871 = vpop.xlane.xlu0 %870
        %v872 = vsel %vm504, %v852, 0.0
        %873 = vadd.xlane.f32.xlu0 %v872
        %v874 = vpop.xlane.xlu0 %873
        %v875 = vsel %vm504, %v853, 0.0
        %876 = vadd.xlane.f32.xlu0 %v875
        %v877 = vpop.xlane.xlu0 %876
        %v878 = vsel %vm504, %v854, 0.0
        %879 = vadd.xlane.f32.xlu0 %v878
        %v880 = vpop.xlane.xlu0 %879
        %v881 = vsel %vm504, %v855, 0.0
        %882 = vadd.xlane.f32.xlu0 %v881
        %v883 = vpop.xlane.xlu0 %882
        %v884 = vsel %vm504, %v856, 0.0
        %885 = vadd.xlane.f32.xlu0 %v884
        %v886 = vpop.xlane.xlu0 %885
        %v887 = vsel %vm504, %v857, 0.0
        %888 = vadd.xlane.f32.xlu0 %v887
        %v889 = vpop.xlane.xlu0 %888
        %v890 = vsel %vm504, %v858, 0.0
        %891 = vadd.xlane.f32.xlu0 %v890
        %v892 = vpop.xlane.xlu0 %891
        %v893 = vsel %vm504, %v859, 0.0
        %894 = vadd.xlane.f32.xlu0 %v893
        %v895 = vpop.xlane.xlu0 %894
        %v896 = vsel %vm504, %v860, 0.0
        %897 = vadd.xlane.f32.xlu0 %v896
        %v898 = vpop.xlane.xlu0 %897
        %v899 = vsel %vm504, %v861, 0.0
        %900 = vadd.xlane.f32.xlu0 %v899
        %v901 = vpop.xlane.xlu0 %900
        %v902 = vsel %vm504, %v862, 0.0
        %903 = vadd.xlane.f32.xlu0 %v902
        %v904 = vpop.xlane.xlu0 %903
        %v905 = vsel %vm504, %v863, 0.0
        %906 = vadd.xlane.f32.xlu0 %v905
        %v907 = vpop.xlane.xlu0 %906
        %v908 = vsel %vm504, %v864, 0.0
        %909 = vadd.xlane.f32.xlu0 %v908
        %v910 = vpop.xlane.xlu0 %909
        %v911 = vsel %vm504, %v865, 0.0
        %912 = vadd.xlane.f32.xlu0 %v911
        %v913 = vpop.xlane.xlu0 %912
        %v914 = vrcp.pop %v868
        %v915 = vrcp.pop %v871
        %v916 = vrcp.pop %v874
        %v917 = vrcp.pop %v877
        %v918 = vrcp.pop %v880
        %v919 = vrcp.pop %v883
        %v920 = vrcp.pop %v886
        %v921 = vrcp.pop %v889
        %v922 = vrcp.pop %v892
        %v923 = vrcp.pop %v895
        %v924 = vrcp.pop %v898
        %v925 = vrcp.pop %v901
        %v926 = vrcp.pop %v904
        %v927 = vrcp.pop %v907
        %v928 = vrcp.pop %v910
        %v929 = vrcp.pop %v913
        %v930 = vmul.f32 %v868, %v914
        %v931 = vmul.f32 %v871, %v915
        %v932 = vmul.f32 %v874, %v916
        %v933 = vmul.f32 %v877, %v917
        %v934 = vmul.f32 %v880, %v918
        %v935 = vmul.f32 %v883, %v919
        %v936 = vmul.f32 %v886, %v920
        %v937 = vmul.f32 %v889, %v921
        %v938 = vmul.f32 %v892, %v922
        %v939 = vmul.f32 %v895, %v923
        %v940 = vmul.f32 %v898, %v924
        %v941 = vmul.f32 %v901, %v925
        %v942 = vmul.f32 %v904, %v926
        %v943 = vmul.f32 %v907, %v927
        %v944 = vmul.f32 %v910, %v928
        %v945 = vmul.f32 %v913, %v929
        %v946 = vsub.f32 2.0, %v930
        %v947 = vsub.f32 2.0, %v931
        %v948 = vsub.f32 2.0, %v932
        %v949 = vsub.f32 2.0, %v933
        %v950 = vsub.f32 2.0, %v934
        %v951 = vsub.f32 2.0, %v935
        %v952 = vsub.f32 2.0, %v936
        %v953 = vsub.f32 2.0, %v937
        %v954 = vsub.f32 2.0, %v938
        %v955 = vsub.f32 2.0, %v939
        %v956 = vsub.f32 2.0, %v940
        %v957 = vsub.f32 2.0, %v941
        %v958 = vsub.f32 2.0, %v942
        %v959 = vsub.f32 2.0, %v943
        %v960 = vsub.f32 2.0, %v944
        %v961 = vsub.f32 2.0, %v945
        %v962 = vmul.f32 %v914, %v946
        %v963 = vmul.f32 %v915, %v947
        %v964 = vmul.f32 %v916, %v948
        %v965 = vmul.f32 %v917, %v949
        %v966 = vmul.f32 %v918, %v950
        %v967 = vmul.f32 %v919, %v951
        %v968 = vmul.f32 %v920, %v952
        %v969 = vmul.f32 %v921, %v953
        %v970 = vmul.f32 %v922, %v954
        %v971 = vmul.f32 %v923, %v955
        %v972 = vmul.f32 %v924, %v956
        %v973 = vmul.f32 %v925, %v957
        %v974 = vmul.f32 %v926, %v958
        %v975 = vmul.f32 %v927, %v959
        %v976 = vmul.f32 %v928, %v960
        %v977 = vmul.f32 %v929, %v961
        %v978 = vmul.f32 %v868, %v962
        %v979 = vmul.f32 %v871, %v963
        %v980 = vmul.f32 %v874, %v964
        %v981 = vmul.f32 %v877, %v965
        %v982 = vmul.f32 %v880, %v966
        %v983 = vmul.f32 %v883, %v967
        %v984 = vmul.f32 %v886, %v968
        %v985 = vmul.f32 %v889, %v969
        %v986 = vmul.f32 %v892, %v970
        %v987 = vmul.f32 %v895, %v971
        %v988 = vmul.f32 %v898, %v972
        %v989 = vmul.f32 %v901, %v973
        %v990 = vmul.f32 %v904, %v974
        %v991 = vmul.f32 %v907, %v975
        %v992 = vmul.f32 %v910, %v976
        %v993 = vmul.f32 %v913, %v977
        %v994 = vsub.f32 2.0, %v978
        %v995 = vsub.f32 2.0, %v979
        %v996 = vsub.f32 2.0, %v980
        %v997 = vsub.f32 2.0, %v981
        %v998 = vsub.f32 2.0, %v982
        %v999 = vsub.f32 2.0, %v983
        %v1000 = vsub.f32 2.0, %v984
        %v1001 = vsub.f32 2.0, %v985
        %v1002 = vsub.f32 2.0, %v986
        %v1003 = vsub.f32 2.0, %v987
        %v1004 = vsub.f32 2.0, %v988
        %v1005 = vsub.f32 2.0, %v989
        %v1006 = vsub.f32 2.0, %v990
        %v1007 = vsub.f32 2.0, %v991
        %v1008 = vsub.f32 2.0, %v992
        %v1009 = vsub.f32 2.0, %v993
        %v1010 = vmul.f32 %v962, %v994
        %v1011 = vmul.f32 %v963, %v995
        %v1012 = vmul.f32 %v964, %v996
        %v1013 = vmul.f32 %v965, %v997
        %v1014 = vmul.f32 %v966, %v998
        %v1015 = vmul.f32 %v967, %v999
        %v1016 = vmul.f32 %v968, %v1000
        %v1017 = vmul.f32 %v969, %v1001
        %v1018 = vmul.f32 %v970, %v1002
        %v1019 = vmul.f32 %v971, %v1003
        %v1020 = vmul.f32 %v972, %v1004
        %v1021 = vmul.f32 %v973, %v1005
        %v1022 = vmul.f32 %v974, %v1006
        %v1023 = vmul.f32 %v975, %v1007
        %v1024 = vmul.f32 %v976, %v1008
        %v1025 = vmul.f32 %v977, %v1009
        %v1042 = vlaneseq
        %v1043 = vand.u32 %v1042, 127
        %v1044 = vlaneseq
        %v1045 = vshrl.u32 %v1044, 7
        %v1046 = vsub.s32 %v1043, %v1045
        %v1047 = vrot.slane %v1010, %v1046
        %v1048 = vlaneseq
        %v1049 = vshrl.u32 %v1048, 7
        %v1050 = vsub.s32 %v1043, %v1049
        %v1051 = vrot.slane %v1011, %v1050
        %v1052 = vlaneseq
        %v1053 = vshrl.u32 %v1052, 7
        %v1054 = vsub.s32 %v1043, %v1053
        %v1055 = vrot.slane %v1012, %v1054
        %v1056 = vlaneseq
        %v1057 = vshrl.u32 %v1056, 7
        %v1058 = vsub.s32 %v1043, %v1057
        %v1059 = vrot.slane %v1013, %v1058
        %v1060 = vlaneseq
        %v1061 = vshrl.u32 %v1060, 7
        %v1062 = vsub.s32 %v1043, %v1061
        %v1063 = vrot.slane %v1014, %v1062
        %v1064 = vlaneseq
        %v1065 = vshrl.u32 %v1064, 7
        %v1066 = vsub.s32 %v1043, %v1065
        %v1067 = vrot.slane %v1015, %v1066
        %v1068 = vlaneseq
        %v1069 = vshrl.u32 %v1068, 7
        %v1070 = vsub.s32 %v1043, %v1069
        %v1071 = vrot.slane %v1016, %v1070
        %v1072 = vlaneseq
        %v1073 = vshrl.u32 %v1072, 7
        %v1074 = vsub.s32 %v1043, %v1073
        %v1075 = vrot.slane %v1017, %v1074
        %v1076 = vlaneseq
        %v1077 = vshrl.u32 %v1076, 7
        %v1078 = vsub.s32 %v1043, %v1077
        %v1079 = vrot.slane %v1018, %v1078
        %v1080 = vlaneseq
        %v1081 = vshrl.u32 %v1080, 7
        %v1082 = vsub.s32 %v1043, %v1081
        %v1083 = vrot.slane %v1019, %v1082
        %v1084 = vlaneseq
        %v1085 = vshrl.u32 %v1084, 7
        %v1086 = vsub.s32 %v1043, %v1085
        %v1087 = vrot.slane %v1020, %v1086
        %v1088 = vlaneseq
        %v1089 = vshrl.u32 %v1088, 7
        %v1090 = vsub.s32 %v1043, %v1089
        %v1091 = vrot.slane %v1021, %v1090
        %v1092 = vlaneseq
        %v1093 = vshrl.u32 %v1092, 7
        %v1094 = vsub.s32 %v1043, %v1093
        %v1095 = vrot.slane %v1022, %v1094
        %v1096 = vlaneseq
        %v1097 = vshrl.u32 %v1096, 7
        %v1098 = vsub.s32 %v1043, %v1097
        %v1099 = vrot.slane %v1023, %v1098
        %v1100 = vlaneseq
        %v1101 = vshrl.u32 %v1100, 7
        %v1102 = vsub.s32 %v1043, %v1101
        %v1103 = vrot.slane %v1024, %v1102
        %v1104 = vlaneseq
        %v1105 = vshrl.u32 %v1104, 7
        %v1106 = vsub.s32 %v1043, %v1105
        %v1107 = vrot.slane %v1025, %v1106
        %vm1108 = vcmask 1041409
        %v1109 = vsel %vm1108, %v1051, %v1047
        %vm1110 = vcmask 1042434
        %v1111 = vsel %vm1110, %v1055, %v1109
        %vm1112 = vcmask 1043459
        %v1113 = vsel %vm1112, %v1059, %v1111
        %vm1114 = vcmask 1044484
        %v1115 = vsel %vm1114, %v1063, %v1113
        %vm1116 = vcmask 1045509
        %v1117 = vsel %vm1116, %v1067, %v1115
        %vm1118 = vcmask 1046534
        %v1119 = vsel %vm1118, %v1071, %v1117
        %vm1120 = vcmask 1047559
        %v1121 = vsel %vm1120, %v1075, %v1119
        %v1122 = vsel %vm1108, %v1083, %v1079
        %v1123 = vsel %vm1110, %v1087, %v1122
        %v1124 = vsel %vm1112, %v1091, %v1123
        %v1125 = vsel %vm1114, %v1095, %v1124
        %v1126 = vsel %vm1116, %v1099, %v1125
        %v1127 = vsel %vm1118, %v1103, %v1126
        %v1128 = vsel %vm1120, %v1107, %v1127
        %v1131 = vmul.f32 %v522, %v1121
        %v1132 = vmul.f32 %v523, %v1128
        %v1133 = vsel %vm504, %v1131, 0.0
        %1134 = vadd.xlane.f32.xlu0 %v1133
        %v1135 = vpop.xlane.xlu0 %1134
        %v1136 = vsel %vm504, %v1132, 0.0
        %1137 = vadd.xlane.f32.xlu0 %v1136
        %v1138 = vpop.xlane.xlu0 %1137
        %v1139 = vrcp.pop %v1135
        %v1140 = vrcp.pop %v1138
        %v1141 = vmul.f32 %v1135, %v1139
        %v1142 = vmul.f32 %v1138, %v1140
        %v1143 = vsub.f32 2.0, %v1141
        %v1144 = vsub.f32 2.0, %v1142
        %v1145 = vmul.f32 %v1139, %v1143
        %v1146 = vmul.f32 %v1140, %v1144
        %v1147 = vmul.f32 %v1135, %v1145
        %v1148 = vmul.f32 %v1138, %v1146
        %v1149 = vsub.f32 2.0, %v1147
        %v1150 = vsub.f32 2.0, %v1148
        %v1151 = vmul.f32 %v1145, %v1149
        %v1152 = vmul.f32 %v1146, %v1150
        %v1153 = vmul.f32 %v522, %v1151
        %v1154 = vmul.f32 %v523, %v1152
        %v1156 = vsel %vm504, %v1153, 0
        %1158 = vmatprep.subr.mxu0 0.0
        %1159 = vmatpush1.msra.mxu0 %v524
        %1160 = vmatprep.subr.mxu0 0.0
        %1161 = vmatpush1.msra.mxu0 0.0
        %1162 = vmatprep.subr.mxu0 0.0
        %1163 = vmatpush1.msra.mxu0 0.0
        %1164 = vmatprep.subr.mxu0 0.0
        %1165 = vmatpush1.msra.mxu0 0.0
        %1166 = vmatprep.subr.mxu0 0.0
        %1167 = vmatpush1.msra.mxu0 0.0
        %1168 = vmatprep.subr.mxu0 0.0
        %1169 = vmatpush1.msra.mxu0 0.0
        %1170 = vmatprep.subr.mxu0 0.0
        %1171 = vmatpush1.msra.mxu0 0.0
        %1172 = vmatprep.subr.mxu0 0.0
        %1173 = vmatpush1.msra.mxu0 0.0
        %1174 = vmatprep.subr.mxu0 0.0
        %1175 = vmatpush1.msra.mxu0 0.0
        %1176 = vmatprep.subr.mxu0 0.0
        %1177 = vmatpush1.msra.mxu0 0.0
        %1178 = vmatprep.subr.mxu0 0.0
        %1179 = vmatpush1.msra.mxu0 0.0
        %1180 = vmatprep.subr.mxu0 0.0
        %1181 = vmatpush1.msra.mxu0 0.0
        %1182 = vmatprep.subr.mxu0 0.0
        %1183 = vmatpush1.msra.mxu0 0.0
        %1184 = vmatprep.subr.mxu0 0.0
        %1185 = vmatpush1.msra.mxu0 0.0
        %1186 = vmatprep.subr.mxu0 0.0
        %1187 = vmatpush1.msra.mxu0 0.0
        %1188 = vmatprep.subr.mxu0 0.0
        %1189 = vmatpush1.msra.mxu0 0.0
        %1190 = vmatprep.subr.mxu0 0.0
        %1191 = vmatpush1.msra.mxu0 0.0
        %1192 = vmatprep.subr.mxu0 0.0
        %1193 = vmatpush1.msra.mxu0 0.0
        %1194 = vmatprep.subr.mxu0 0.0
        %1195 = vmatpush1.msra.mxu0 0.0
        %1196 = vmatprep.subr.mxu0 0.0
        %1197 = vmatpush1.msra.mxu0 0.0
        %1198 = vmatprep.subr.mxu0 0.0
        %1199 = vmatpush1.msra.mxu0 0.0
        %1200 = vmatprep.subr.mxu0 0.0
        %1201 = vmatpush1.msra.mxu0 0.0
        %1202 = vmatprep.subr.mxu0 0.0
        %1203 = vmatpush1.msra.mxu0 0.0
        %1204 = vmatprep.subr.mxu0 0.0
        %1205 = vmatpush1.msra.mxu0 0.0
        %1206 = vmatprep.subr.mxu0 0.0
        %1207 = vmatpush1.msra.mxu0 0.0
        %1208 = vmatprep.subr.mxu0 0.0
        %1209 = vmatpush1.msra.mxu0 0.0
        %1210 = vmatprep.subr.mxu0 0.0
        %1211 = vmatpush1.msra.mxu0 0.0
        %1212 = vmatprep.subr.mxu0 0.0
        %1213 = vmatpush1.msra.mxu0 0.0
        %1214 = vmatprep.subr.mxu0 0.0
        %1215 = vmatpush1.msra.mxu0 0.0
        %1216 = vmatprep.subr.mxu0 0.0
        %1217 = vmatpush1.msra.mxu0 0.0
        %1218 = vmatprep.subr.mxu0 0.0
        %1219 = vmatpush1.msra.mxu0 0.0
        %1220 = vmatprep.subr.mxu0 0.0
        %1221 = vmatpush1.msra.mxu0 0.0
        %1222 = vmatprep.mubr.f32.mxu0 0.0
        %1223 = vmatmul.mubr.f32.gmra.mrb[0].mxu0 %v1156
        %v1224 = vpop.f32.mrb[0].mxu0
        %v1225 = vadd.f32 0.0, %v1224
        %v1226 = vpop.f32.mrb[0].mxu0
        %1227 = vdwg.mxu0
        %v1229 = vsel %vm504, %v1154, 0
        %1231 = vmatprep.subr.mxu0 0.0
        %1232 = vmatpush1.msra.mxu0 %v525
        %1233 = vmatprep.subr.mxu0 0.0
        %1234 = vmatpush1.msra.mxu0 0.0
        %1235 = vmatprep.subr.mxu0 0.0
        %1236 = vmatpush1.msra.mxu0 0.0
        %1237 = vmatprep.subr.mxu0 0.0
        %1238 = vmatpush1.msra.mxu0 0.0
        %1239 = vmatprep.subr.mxu0 0.0
        %1240 = vmatpush1.msra.mxu0 0.0
        %1241 = vmatprep.subr.mxu0 0.0
        %1242 = vmatpush1.msra.mxu0 0.0
        %1243 = vmatprep.subr.mxu0 0.0
        %1244 = vmatpush1.msra.mxu0 0.0
        %1245 = vmatprep.subr.mxu0 0.0
        %1246 = vmatpush1.msra.mxu0 0.0
        %1247 = vmatprep.subr.mxu0 0.0
        %1248 = vmatpush1.msra.mxu0 0.0
        %1249 = vmatprep.subr.mxu0 0.0
        %1250 = vmatpush1.msra.mxu0 0.0
        %1251 = vmatprep.subr.mxu0 0.0
        %1252 = vmatpush1.msra.mxu0 0.0
        %1253 = vmatprep.subr.mxu0 0.0
        %1254 = vmatpush1.msra.mxu0 0.0
        %1255 = vmatprep.subr.mxu0 0.0
        %1256 = vmatpush1.msra.mxu0 0.0
        %1257 = vmatprep.subr.mxu0 0.0
        %1258 = vmatpush1.msra.mxu0 0.0
        %1259 = vmatprep.subr.mxu0 0.0
        %1260 = vmatpush1.msra.mxu0 0.0
        %1261 = vmatprep.subr.mxu0 0.0
        %1262 = vmatpush1.msra.mxu0 0.0
        %1263 = vmatprep.subr.mxu0 0.0
        %1264 = vmatpush1.msra.mxu0 0.0
        %1265 = vmatprep.subr.mxu0 0.0
        %1266 = vmatpush1.msra.mxu0 0.0
        %1267 = vmatprep.subr.mxu0 0.0
        %1268 = vmatpush1.msra.mxu0 0.0
        %1269 = vmatprep.subr.mxu0 0.0
        %1270 = vmatpush1.msra.mxu0 0.0
        %1271 = vmatprep.subr.mxu0 0.0
        %1272 = vmatpush1.msra.mxu0 0.0
        %1273 = vmatprep.subr.mxu0 0.0
        %1274 = vmatpush1.msra.mxu0 0.0
        %1275 = vmatprep.subr.mxu0 0.0
        %1276 = vmatpush1.msra.mxu0 0.0
        %1277 = vmatprep.subr.mxu0 0.0
        %1278 = vmatpush1.msra.mxu0 0.0
        %1279 = vmatprep.subr.mxu0 0.0
        %1280 = vmatpush1.msra.mxu0 0.0
        %1281 = vmatprep.subr.mxu0 0.0
        %1282 = vmatpush1.msra.mxu0 0.0
        %1283 = vmatprep.subr.mxu0 0.0
        %1284 = vmatpush1.msra.mxu0 0.0
        %1285 = vmatprep.subr.mxu0 0.0
        %1286 = vmatpush1.msra.mxu0 0.0
        %1287 = vmatprep.subr.mxu0 0.0
        %1288 = vmatpush1.msra.mxu0 0.0
        %1289 = vmatprep.subr.mxu0 0.0
        %1290 = vmatpush1.msra.mxu0 0.0
        %1291 = vmatprep.subr.mxu0 0.0
        %1292 = vmatpush1.msra.mxu0 0.0
        %1293 = vmatprep.subr.mxu0 0.0
        %1294 = vmatpush1.msra.mxu0 0.0
        %1295 = vmatprep.mubr.f32.mxu0 0.0
        %1296 = vmatmul.mubr.f32.gmra.mrb[0].mxu0 %v1229
        %v1297 = vpop.f32.mrb[0].mxu0
        %v1298 = vadd.f32 0.0, %v1297
        %v1299 = vpop.f32.mrb[0].mxu0
        %1300 = vdwg.mxu0
        %1301 = vst.msk [vmem:[%s294] sm:$0xff] %vm339, %v1225
        %1302 = vst.msk [vmem:[%s294 + $0x8] sm:$0xff] %vm339, %v1298
        %1303 = vst.msk [vmem:[%s301] sm:$0xff] %vm504, %v1153
        %1304 = vst.msk [vmem:[%s301 + $0x8] sm:$0xff] %vm504, %v1154
        %s1305 = sand.u32 %s151, 1
        %s1306 = scalar_lea.sflag [#allocation3], %s1305
        %s1307 = sand.u32 %s151, 1
        %s1308 = smul.addr %s1307, 16
        %s1309 = scalar_lea.vmem [#allocation2], %s1308
        %s1310 = sand.u32 %s179, 1
        %s1311 = scalar_lea.sflag [#allocation5], %s1310
        %s1312 = sand.u32 %s179, 1
        %s1313 = smul.addr %s1312, 16
        %s1314 = scalar_lea.vmem [#allocation4], %s1313
        // Predicated region
        $region37: #{tpu_custom_call.1} parent=35 // pred_check
          %p1315 = pneg %p161
        $region38: #{tpu_custom_call.1} parent=35 // pred_check_branch
          %1317 = sbr.rel (%p1315) target = $region40
        $region39: #{tpu_custom_call.1} parent=35 // pred_region
          %s1318 = smul.u32 2, %s27
          %s1320 = ssub.s32 256, 256
          %1321 = vsyncadd %s1306, %s1320
          %s1322 = sadd.s32 %s28, %s1318
          %s1323 = smul.addr %s1322, 128
          %s1324 = scalar_lea.hbm %s4, %s1323
          %s1325 = sshll.u32 %s1309, 4
          %s1326 = int_to_ptr.vmem [resolvable:$true] %s1325
          %1331 = dma.vmem_to_hbm [thread:$0]  %s1326, 256, %s1324, %s1306, 128, 128, 8
        $region40: #{tpu_custom_call.1} parent=35 // pred_fallthru
          _
        // Predicated region
        $region41: #{tpu_custom_call.1} parent=35 // pred_check
          %p1332 = pneg %p189
        $region42: #{tpu_custom_call.1} parent=35 // pred_check_branch
          %1334 = sbr.rel (%p1332) target = $region44
        $region43: #{tpu_custom_call.1} parent=35 // pred_region
          %s1335 = smul.u32 2, %s27
          %s1337 = ssub.s32 256, 256
          %1338 = vsyncadd %s1311, %s1337
          %s1339 = sadd.s32 %s28, %s1335
          %s1340 = smul.addr %s1339, 128
          %s1341 = scalar_lea.hbm %s5, %s1340
          %s1342 = sshll.u32 %s1314, 4
          %s1343 = int_to_ptr.vmem [resolvable:$true] %s1342
          %1348 = dma.vmem_to_hbm [thread:$0]  %s1343, 256, %s1341, %s1311, 128, 128, 8
        $region44: #{tpu_custom_call.1} parent=35 // pred_fallthru
          _
      $region36: #{tpu_custom_call.1} parent=5 // pred_fallthru
        _
      %p1349 = scmp.le.s32.totalorder 2, %s18
      // Predicated region
      $region45: #{tpu_custom_call.1} parent=5 // pred_check
        %p1350 = pneg %p1349
      $region46: #{tpu_custom_call.1} parent=5 // pred_check_branch
        %1352 = sbr.rel (%p1350) target = $region48
      $region47: #{tpu_custom_call.1} parent=5 // pred_region
        %s1353 = ssub.s32 %s18, 2
        // Predicated region
        $region49: #{tpu_custom_call.1} parent=47 // pred_check
          %p1354 = pneg %p167
        $region50: #{tpu_custom_call.1} parent=47 // pred_check_branch
          %1356 = sbr.rel (%p1354) target = $region52
        $region51: #{tpu_custom_call.1} parent=47 // pred_region
          %s1357 = sand.u32 %s152, 1
          %s1358 = scalar_lea.sflag [#allocation3], %s1357
          %s1359 = sand.u32 %s152, 1
          %s1360 = smul.addr %s1359, 16
          %s1361 = scalar_lea.vmem [#allocation2], %s1360
          %1362 = dma.done %s1358, 256
        $region52: #{tpu_custom_call.1} parent=47 // pred_fallthru
          _
        // Predicated region
        $region53: #{tpu_custom_call.1} parent=47 // pred_check
          %p1363 = pneg %p195
        $region54: #{tpu_custom_call.1} parent=47 // pred_check_branch
          %1365 = sbr.rel (%p1363) target = $region56
        $region55: #{tpu_custom_call.1} parent=47 // pred_region
          %s1366 = sand.u32 %s180, 1
          %s1367 = scalar_lea.sflag [#allocation5], %s1366
          %s1368 = sand.u32 %s180, 1
          %s1369 = smul.addr %s1368, 16
          %s1370 = scalar_lea.vmem [#allocation4], %s1369
          %1371 = dma.done %s1367, 256
        $region56: #{tpu_custom_call.1} parent=47 // pred_fallthru
          _
      $region48: #{tpu_custom_call.1} parent=5 // pred_fallthru
        _
    $region6: #{tpu_custom_call.1} parent=1 // loop_footer
      %s22 = sadd.s32 1, %s18
    $region7: #{tpu_custom_call.1} parent=1 // loop_footer_branch
      %17 = sbr.rel target = $region3
    $region8: #{tpu_custom_call.1} parent=1 // loop_exit
      _
    %1372 = vsyncpa [#allocation3], 1
    %s1373 = scalar_lea.sflag [#allocation3], 1
    %1374 = vsyncpa %s1373, 1
    %1375 = vsyncpa [#allocation5], 1
    %s1376 = scalar_lea.sflag [#allocation5], 1
    %1377 = vsyncpa %s1376, 1

</llo_original>
